<compile_context>
chip_gen: v7x
topology: tpu7x:2x2x1
jax: 0.10.0
libtpu: 0.0.40
codegen_flags: <defaults>
</compile_context>

<pallas_src>
import math

import jax
import jax.numpy as jnp
from jax.experimental import pallas as pl
from jax.experimental.pallas import tpu as pltpu


def _round_up(v, m):
    return ((v + m - 1) // m) * m


def _chip_tuning():
    """Per-generation tile caps, vmem limit, and minimum grid-block floor."""
    kind = ""
    try:
        kind = jax.devices()[0].device_kind.lower()
    except Exception:
        pass
    if "v5" in kind:
        # ~820 GB/s HBM: per-step overhead already <4%; the explicit limit only
        # needs to exceed the 16 MiB v5e scoped default without pressuring
        # compiler-internal scratch.
        return dict(lane_cap=128 * 1024, batch_cap=8,
                    vmem_limit=28 * 1024 * 1024, min_blocks=1)
    if "v6" in kind:
        # 4 MiB f32 streaming blocks already sit on the ~85-86% HBM-roofline
        # plateau on v6e; bigger tiles buy nothing here.
        return dict(lane_cap=128 * 1024, batch_cap=8,
                    vmem_limit=40 * 1024 * 1024, min_blocks=1)
    if "7" in kind:
        # v7x: 3.2 TB/s/TC HBM -> double the per-step block bytes (8 MiB blocks,
        # ~33 MiB double-buffered working set < 48 MiB limit < 64 MiB VMEM) to
        # amortize the ~0.35us step overhead, and require >=2 grid blocks so
        # both TensorCores get work.
        return dict(lane_cap=128 * 1024, batch_cap=16,
                    vmem_limit=48 * 1024 * 1024, min_blocks=2)
    # Unknown / future chips (or CPU interpret): conservative v6e-like defaults.
    return dict(lane_cap=128 * 1024, batch_cap=8,
                vmem_limit=40 * 1024 * 1024, min_blocks=1)


def _add_pe_kernel(x_ref, pe_ref, o_ref):
    # (bt, ct) x-block + (1, ct) pe-block broadcast-add over the batch rows.
    # Add in f32 (no bf16 VALU on v5e; preserves accuracy), cast at the store.
    o_ref[...] = (x_ref[...].astype(jnp.float32)
                  + pe_ref[...].astype(jnp.float32)).astype(o_ref.dtype)


def positional_encoding(x, max_len=5000, *, lane_tile_cap=None, batch_tile_cap=None):
    """x: (B, S, D). Returns x + pe[None, :S, :] (batch-first, as in the PyTorch forward)."""
    B, S, D = x.shape
    assert S <= max_len
    # TODO(synk): the PyTorch odd-d_model branch slices div_term inconsistently
    # (shape-mismatched assignment would raise); only the even path is implemented.
    assert D % 2 == 0, "odd d_model is unsupported (mirrors the PyTorch module's bug)"

    tune = _chip_tuning()
    lane_cap = lane_tile_cap if lane_tile_cap is not None else tune["lane_cap"]
    chip_batch_cap = batch_tile_cap if batch_tile_cap is not None else tune["batch_cap"]
    min_blocks = tune["min_blocks"]

    # --- PE table hoisted out of the kernel (computed once, plain XLA ops). ---
    position = jnp.arange(S, dtype=jnp.float32)[:, None]                  # (S, 1)
    div_term = jnp.exp(jnp.arange(0, D, 2, dtype=jnp.float32)
                       * (-math.log(10000.0) / D))                        # (D//2,)
    angles = position * div_term                                          # (S, D//2)
    # Interleave -> pe[:, 0::2] = sin, pe[:, 1::2] = cos.
    pe = jnp.stack([jnp.sin(angles), jnp.cos(angles)], axis=-1).reshape(S, D)

    # Store pe in bf16 only when x is bf16 (halves its HBM read / VMEM footprint);
    # the in-kernel add is still f32.
    pe_dtype = jnp.bfloat16 if x.dtype == jnp.bfloat16 else jnp.float32

    # --- Flatten to a row-wise, lane-dense layout. ----------------------------
    N = S * D
    x2 = x.reshape(B, N)
    pe2 = pe.reshape(1, N).astype(pe_dtype)

    # Dtype-aware sublane tiling: sub-32-bit dtypes pack along sublanes.
    itemsize = jnp.dtype(x.dtype).itemsize
    sublane_mult = {4: 8, 2: 16, 1: 32}.get(itemsize, 8)
    bt_cap = max(chip_batch_cap, sublane_mult)

    # Lane chunk: whole row if it fits, else balanced 128-aligned chunks
    # (avoids one big chunk + a short ragged tail with masked partial stores).
    if N <= lane_cap:
        ct = N
    else:
        n_chunks = pl.cdiv(N, lane_cap)
        ct = 128 * pl.cdiv(pl.cdiv(N, 128), n_chunks)
    bt = B if B <= bt_cap else bt_cap

    # Megacore floor (v7x): guarantee >= min_blocks grid blocks so both
    # TensorCores get work. Applied AFTER sizing blocks, as a floor.
    for _ in range(16):
        if pl.cdiv(N, ct) * pl.cdiv(B, bt) >= min_blocks:
            break
        new_bt = _round_up(max(1, bt // 2), sublane_mult)    # stays sublane-aligned
        if new_bt < bt:
            bt = new_bt
            continue
        new_ct = 128 * max(1, (pl.cdiv(ct, 128) + 1) // 2)   # stays 128-aligned
        if new_ct < ct:
            ct = new_ct
            continue
        break  # nothing left to split (tiny input); a single block is fine

    # Batch is the innermost grid axis and pe's index_map ignores it, so the pe
    # chunk stays resident in VMEM across the batch loop. When ct == N the pe
    # BlockSpec covers the whole array (explicit residency, constant index).
    grid = (pl.cdiv(N, ct), pl.cdiv(B, bt))

    out2 = pl.pallas_call(
        _add_pe_kernel,
        out_shape=jax.ShapeDtypeStruct((B, N), x.dtype),
        grid=grid,
        in_specs=[
            pl.BlockSpec((bt, ct), lambda c, b: (b, c)),
            pl.BlockSpec((1, ct), lambda c, b: (0, c)),   # independent of the batch index
        ],
        out_specs=pl.BlockSpec((bt, ct), lambda c, b: (b, c)),
        compiler_params=pltpu.CompilerParams(
            dimension_semantics=("parallel", "parallel"),
            vmem_limit_bytes=tune["vmem_limit"],
        ),
    )(x2, pe2)
    return out2.reshape(B, S, D)


def _reference(x, max_len=5000):
    """Pure-JAX mirror of the PyTorch buffer construction + forward (even d_model)."""
    B, S, D = x.shape
    position = jnp.arange(max_len, dtype=jnp.float32)[:, None]
    div_term = jnp.exp(jnp.arange(0, D, 2, dtype=jnp.float32) * (-math.log(10000.0) / D))
    pe = jnp.zeros((max_len, D), jnp.float32)
    pe = pe.at[:, 0::2].set(jnp.sin(position * div_term))
    pe = pe.at[:, 1::2].set(jnp.cos(position * div_term))
    return x + pe[None, :S, :]


if __name__ == "__main__":
    key = jax.random.PRNGKey(0)

    # 1) Small shape consistent with the module (batch-first transformer input).
    B, S, D = 2, 8, 32
    x = jax.random.normal(key, (B, S, D), dtype=jnp.float32)
    out = positional_encoding(x)
    jax.block_until_ready(out)
    assert out.shape == (B, S, D) and out.dtype == x.dtype
    assert jnp.allclose(out, _reference(x), atol=1e-5, rtol=1e-5)

    # 2) Multi-block (batch-tiled) grid path.
    B2, S2, D2 = 16, 64, 128
    x_big = jax.random.normal(jax.random.PRNGKey(1), (B2, S2, D2), dtype=jnp.float32)
    out_big = positional_encoding(x_big)
    jax.block_until_ready(out_big)
    assert jnp.allclose(out_big, _reference(x_big), atol=1e-5, rtol=1e-5)

    # 3) Ragged-tail path: non-divisible S*D and batch, forcing small tile caps
    #    so the masked tail blocks (lanes and sublanes) are exercised.
    B3, S3, D3 = 12, 7, 36
    x_rag = jax.random.normal(jax.random.PRNGKey(2), (B3, S3, D3), dtype=jnp.float32)
    out_rag = positional_encoding(x_rag, lane_tile_cap=128, batch_tile_cap=8)
    jax.block_until_ready(out_rag)
    assert jnp.allclose(out_rag, _reference(x_rag), atol=1e-5, rtol=1e-5)

    # 4) bf16 input: pe streamed as bf16, add in f32, output kept in bf16
    #    (documented divergence from PyTorch's f32 promotion).
    B4, S4, D4 = 4, 16, 64
    x_bf = jax.random.normal(jax.random.PRNGKey(3), (B4, S4, D4), dtype=jnp.bfloat16)
    out_bf = positional_encoding(x_bf)
    jax.block_until_ready(out_bf)
    assert out_bf.dtype == jnp.bfloat16
    ref_bf = _reference(x_bf.astype(jnp.float32))
    assert jnp.allclose(out_bf.astype(jnp.float32), ref_bf, atol=5e-2, rtol=5e-2)

    print("KERNEL_OK")
</pallas_src>

<mosaic_0001>
module attributes {stable_mosaic.version = 11 : i64} {
  func.func @_add_pe_kernel(%arg0: i32, %arg1: i32, %arg2: memref<2x256xf32, #tpu.memory_space<vmem>>, %arg3: memref<1x256xf32, #tpu.memory_space<vmem>>, %arg4: memref<2x256xf32, #tpu.memory_space<vmem>>) attributes {dimension_semantics = [#tpu.dimension_semantics<parallel>, #tpu.dimension_semantics<parallel>], iteration_bounds = array<i64: 1, 1>, scalar_prefetch = 0 : i64, scratch_operands = 0 : i64, tpu.core_type = #tpu.core_type<tc>, window_params = [{transform_indices = @transform_0, window_bounds = array<i64: 2, 256>}, {transform_indices = @transform_1, window_bounds = array<i64: 1, 256>}, {transform_indices = @transform_2, window_bounds = array<i64: 2, 256>}]} {
    %c0 = arith.constant 0 : index
    %c0_0 = arith.constant 0 : index
    %0 = vector.load %arg2[%c0, %c0_0] : memref<2x256xf32, #tpu.memory_space<vmem>>, vector<2x256xf32>
    %c0_1 = arith.constant 0 : index
    %c0_2 = arith.constant 0 : index
    %1 = vector.load %arg3[%c0_1, %c0_2] : memref<1x256xf32, #tpu.memory_space<vmem>>, vector<1x256xf32>
    %2 = vector.broadcast %1 : vector<1x256xf32> to vector<2x256xf32>
    %3 = arith.addf %0, %2 : vector<2x256xf32>
    %c0_3 = arith.constant 0 : index
    %c0_4 = arith.constant 0 : index
    %4 = vector.load %arg4[%c0_3, %c0_4] : memref<2x256xf32, #tpu.memory_space<vmem>>, vector<2x256xf32>
    tpu.vector_store %arg4[%c0_3, %c0_4], %3 {strides = array<i32>} : memref<2x256xf32, #tpu.memory_space<vmem>>, vector<2x256xf32>,
    return
  }
  func.func @transform_0(%arg0: i32, %arg1: i32) -> (i32, i32) {
    %c0_i32 = arith.constant 0 : i32
    return %arg1, %arg0 : i32, i32
  }
  func.func @transform_1(%arg0: i32, %arg1: i32) -> (i32, i32) {
    %c0_i32 = arith.constant 0 : i32
    %c0_i32_0 = arith.constant 0 : i32
    return %c0_i32, %arg0 : i32, i32
  }
  func.func @transform_2(%arg0: i32, %arg1: i32) -> (i32, i32) {
    %c0_i32 = arith.constant 0 : i32
    return %arg1, %arg0 : i32, i32
  }
}

</mosaic_0001>

<llo_original>
// kernel: tpu_custom_call.1
$region0: #{tpu_custom_call.1}
  #allocation0 [shape = 'u32[]', space=smem, size = 0x4, offset = 0x4, fixed_abs, tag = 'smem constant byte address 0x4 - core index']
  #allocation1 [shape = 'u32[144,128]{1,0:T(1,128)}', space=vmem, size = 0x12000, scoped, tag = 'internal scratch']
  %s0 = inlined_call_operand.hbm [shape: f32[2,256], index: 0, kind: input, shape index: {}]
  %s1 = inlined_call_operand.vmem [shape: f32[1,256], index: 1, kind: input, shape index: {}]
  %s2 = inlined_call_operand.hbm [shape: f32[2,256], index: 2, kind: output, shape index: {}]
  %s3 = sld [smem:[#allocation0]]
  $region22: #{tpu_custom_call.1} parent=0
    _
  %s5 = ssub.s32 1, %s3
  %s6 = scalar_select 0, %s5, %s3
  $region1: #{tpu_custom_call.1} parent=0
    #allocation2 [shape = 'u8[2048]{0}', space=vmem, size = 0x800, scoped, tag = 'input window, operand 0, single buffered']
    #allocation3 [shape = 's32[1]{0}', space=sflag, size = 0x4, scoped, tag = 'scoped memory for tpu_custom_call.1']
    #allocation4 [shape = 's32[1]{0}', space=sflag, size = 0x4, scoped, tag = 'scoped memory for tpu_custom_call.1']
    #allocation5 [shape = 'u8[2048]{0}', space=vmem, size = 0x800, scoped, tag = 'output window, operand 0, single buffered']
    %7 = vsyncpa [#allocation3], 0
    %8 = vsyncpa [#allocation4], 0
    // Predicated region
    $region2: #{tpu_custom_call.1} parent=1 // pred_check
      _
    $region3: #{tpu_custom_call.1} parent=1 // pred_check_branch
      %10 = sbr.rel (0) target = $region5
    $region4: #{tpu_custom_call.1} parent=1 // pred_region
      %s12 = ssub.s32 64, 64
      %13 = vsyncadd [#allocation3], %s12
      %s15 = sshll.u32 [#allocation2], 4
      %s16 = int_to_ptr.vmem [resolvable:$true] %s15
      %18 = dma.hbm_to_vmem [thread:$0]  %s0, 64, %s16, [#allocation3]
    $region5: #{tpu_custom_call.1} parent=1 // pred_fallthru
      _
    // Predicated region
    $region6: #{tpu_custom_call.1} parent=1 // pred_check
      _
    $region7: #{tpu_custom_call.1} parent=1 // pred_check_branch
      %20 = sbr.rel (0) target = $region9
    $region8: #{tpu_custom_call.1} parent=1 // pred_region
      _
    $region9: #{tpu_custom_call.1} parent=1 // pred_fallthru
      _
    // Predicated region
    $region10: #{tpu_custom_call.1} parent=1 // pred_check
      _
    $region11: #{tpu_custom_call.1} parent=1 // pred_check_branch
      %22 = sbr.rel (0) target = $region13
    $region12: #{tpu_custom_call.1} parent=1 // pred_region
      %23 = dma.done [#allocation3], 64
    $region13: #{tpu_custom_call.1} parent=1 // pred_fallthru
      _
    %v24 = vld [vmem:[#allocation2] sm:$0xf]
    %v25 = vld [vmem:[%s1] sm:$0x3]
    %v27 = vlaneseq
    %v28 = vshrl.u32 %v27, 7
    %v29 = vsub.s32 0, %v28
    %v30 = vrot.slane %v25, %v29
    %v31 = vlaneseq
    %v32 = vshrl.u32 %v31, 7
    %v33 = vsub.s32 1, %v32
    %v34 = vrot.slane %v25, %v33
    %v35 = vcombine.low %v30, %v34
    %v37 = vunpack.c.l.s4 1983009808
    %v38 = vunpack.c.0.s8 %v37
    %v39 = vlaneseq
    %v40 = vshrl.u32 %v39, 7
    %v41 = vsub.s32 %v38, %v40
    %v42 = vrot.slane %v35, %v41
    %v44 = vadd.f32 %v24, %v42
    %45 = vst [vmem:[#allocation5] sm:$0xf] %v44
    // Predicated region
    $region14: #{tpu_custom_call.1} parent=1 // pred_check
      _
    $region15: #{tpu_custom_call.1} parent=1 // pred_check_branch
      %47 = sbr.rel (0) target = $region17
    $region16: #{tpu_custom_call.1} parent=1 // pred_region
      %s49 = ssub.s32 64, 64
      %50 = vsyncadd [#allocation4], %s49
      %s52 = sshll.u32 [#allocation5], 4
      %s53 = int_to_ptr.vmem [resolvable:$true] %s52
      %55 = dma.vmem_to_hbm [thread:$0]  %s53, 64, %s2, [#allocation4]
    $region17: #{tpu_custom_call.1} parent=1 // pred_fallthru
      _
    // Predicated region
    $region18: #{tpu_custom_call.1} parent=1 // pred_check
      _
    $region19: #{tpu_custom_call.1} parent=1 // pred_check_branch
      %57 = sbr.rel (0) target = $region21
    $region20: #{tpu_custom_call.1} parent=1 // pred_region
      %58 = dma.done [#allocation4], 64
    $region21: #{tpu_custom_call.1} parent=1 // pred_fallthru
      _
    %59 = vsyncpa [#allocation3], 1
    %60 = vsyncpa [#allocation4], 1

</llo_original>
